<compile_context>
chip_gen: v5e
topology: v5e:2x2
jax: 0.10.0
libtpu: 0.0.40
codegen_flags: <defaults>
</compile_context>

<pallas_src>
import numpy as np
import jax
import jax.numpy as jnp
from jax.experimental import pallas as pl
from jax.experimental.pallas import tpu as pltpu


def _sigmoid_approx(v):
    # 1 / (1 + exp(-v)); the approximate reciprocal rides the otherwise-idle EUP slot.
    return pl.reciprocal(1.0 + jnp.exp(-v), approx=True)


def cnn_lstm_kernel(xcol_ref,    # (S*B, 3*D_IN) bf16  im2col rows, row index = t*B + b
                    wconv_ref,   # (3*D_IN, C)   bf16  conv taps stacked [k=0 | k=1 | k=2]
                    bconv_ref,   # (1, C)        f32
                    wih_ref,     # (C, 4H)       bf16  gate cols permuted to i|f|o|g
                    whh_ref,     # (H, 4H)       bf16  gate cols permuted to i|f|o|g
                    blstm_ref,   # (1, 4H)       f32   b_ih + b_hh, i|f|o|g
                    wfc_ref,     # (H, 1)        f32
                    bfc_ref,     # (1, 1)        f32
                    out_ref):    # (B, 1)        f32
    B = out_ref.shape[0]
    SB = xcol_ref.shape[0]
    S = SB // B
    H = whh_ref.shape[0]

    # Conv1d(kernel_size=3, padding=1) + ReLU as a single im2col matmul for all (t, b).
    conv = jnp.dot(xcol_ref[...], wconv_ref[...],
                   preferred_element_type=jnp.float32) + bconv_ref[...]
    conv = jnp.maximum(conv, 0.0)                                   # (S*B, C) f32

    # Hoisted input-side LSTM contribution for every timestep at once.
    wx = jnp.dot(conv.astype(wih_ref.dtype), wih_ref[...],
                 preferred_element_type=jnp.float32) + blstm_ref[...]  # (S*B, 4H) f32

    whh = whh_ref[...]
    h = jnp.zeros((B, H), jnp.float32)
    c = jnp.zeros((B, H), jnp.float32)

    # Sequential recurrence: statically unrolled (S is small and static).
    # One (B, H) @ (H, 4H) matmul + elementwise per step.
    for t in range(S):
        z = wx[t * B:(t + 1) * B, :] + jnp.dot(
            h.astype(whh.dtype), whh, preferred_element_type=jnp.float32)  # (B, 4H)
        sig = _sigmoid_approx(z[:, 0:3 * H])    # contiguous i|f|o slab, one EUP pass
        g = jnp.tanh(z[:, 3 * H:4 * H])
        i = sig[:, 0:H]
        f = sig[:, H:2 * H]
        o = sig[:, 2 * H:3 * H]
        c = f * c + i * g
        h = o * jnp.tanh(c)

    # Final Linear(H -> 1) on the last hidden state.
    out_ref[...] = (jnp.dot(h, wfc_ref[...], preferred_element_type=jnp.float32)
                    + bfc_ref[...])


def cnn_lstm_forward(x, params):
    """x: (B, S, D_in) f32 (PyTorch forward layout). Returns (B, 1) f32."""
    w_cnn, b_cnn, w_ih, w_hh, b_ih, b_hh, w_fc, b_fc = params
    B, S, D = x.shape
    C = w_cnn.shape[0]
    H = w_hh.shape[1]

    # ---------- layout plumbing (wrapper-side; no compute hoisted) ----------
    # im2col for the k=3, padding=1 conv. Rows are ordered (t, b) so the B rows
    # feeding LSTM step t are contiguous inside the kernel.
    xpad = jnp.pad(x, ((0, 0), (1, 1), (0, 0)))                      # (B, S+2, D)
    xcol = jnp.concatenate(
        [xpad[:, 0:S, :], xpad[:, 1:S + 1, :], xpad[:, 2:S + 2, :]], axis=-1)  # (B,S,3D)
    xcol = jnp.transpose(xcol, (1, 0, 2)).reshape(S * B, 3 * D)      # (S*B, 3D)

    # Conv weight (C, D, 3) -> (3D, C), block k is W[:, :, k].T (matches the concat).
    wconv = jnp.transpose(w_cnn, (2, 1, 0)).reshape(3 * D, C)
    bconv = b_cnn.reshape(1, C).astype(jnp.float32)

    # LSTM gate weights: torch order along 4H is i|f|g|o; permute to i|f|o|g so the
    # sigmoid gates are contiguous, then transpose to (feat, 4H).
    def _regate(w):
        return jnp.concatenate([w[0:2 * H], w[3 * H:4 * H], w[2 * H:3 * H]], axis=0)

    wih = _regate(w_ih).T                                            # (C, 4H)
    whh = _regate(w_hh).T                                            # (H, 4H)
    blstm = _regate(b_ih + b_hh).reshape(1, 4 * H).astype(jnp.float32)

    wfc = w_fc.T.astype(jnp.float32)                                 # (H, 1)
    bfc = b_fc.reshape(1, 1).astype(jnp.float32)

    # bf16 MXU operands (native on v6e/v7x); accumulation & state remain f32.
    xcol = xcol.astype(jnp.bfloat16)
    wconv = wconv.astype(jnp.bfloat16)
    wih = wih.astype(jnp.bfloat16)
    whh = whh.astype(jnp.bfloat16)

    vmem = pl.BlockSpec(memory_space=pltpu.MemorySpace.VMEM)
    return pl.pallas_call(
        cnn_lstm_kernel,
        out_shape=jax.ShapeDtypeStruct((B, 1), jnp.float32),
        in_specs=[vmem] * 8,
        out_specs=vmem,
    )(xcol, wconv, bconv, wih, whh, blstm, wfc, bfc)


def reference_forward(x, params):
    """Pure-JAX reference mirroring PyTorch semantics (weights in torch layout)."""
    w_cnn, b_cnn, w_ih, w_hh, b_ih, b_hh, w_fc, b_fc = params
    B, S, _ = x.shape
    H = w_hh.shape[1]

    xt = jnp.transpose(x, (0, 2, 1))                                 # NCH
    conv = jax.lax.conv_general_dilated(
        xt, w_cnn, window_strides=(1,), padding=((1, 1),),
        dimension_numbers=("NCH", "OIH", "NCH"))
    feats = jnp.transpose(jnp.maximum(conv + b_cnn[None, :, None], 0.0), (0, 2, 1))

    h = jnp.zeros((B, H), jnp.float32)
    c = jnp.zeros((B, H), jnp.float32)
    for t in range(S):
        z = feats[:, t, :] @ w_ih.T + h @ w_hh.T + b_ih + b_hh
        i = jax.nn.sigmoid(z[:, 0:H])
        f = jax.nn.sigmoid(z[:, H:2 * H])
        g = jnp.tanh(z[:, 2 * H:3 * H])
        o = jax.nn.sigmoid(z[:, 3 * H:4 * H])
        c = f * c + i * g
        h = o * jnp.tanh(c)
    return h @ w_fc.T + b_fc


if __name__ == "__main__":
    B, S, D_IN = 2, 8, 8          # batch, seq_len, input_size
    C_CNN, H_LSTM = 32, 64        # module defaults: cnn_channels=32, lstm_hidden_size=64

    key = jax.random.PRNGKey(0)
    ks = jax.random.split(key, 9)
    x = jax.random.normal(ks[0], (B, S, D_IN), jnp.float32)

    def u(k, shape, fan_in):      # PyTorch-style uniform(-1/sqrt(fan_in), 1/sqrt(fan_in))
        bound = 1.0 / np.sqrt(fan_in)
        return jax.random.uniform(k, shape, jnp.float32, -bound, bound)

    w_cnn = u(ks[1], (C_CNN, D_IN, 3), D_IN * 3)        # Conv1d.weight (C_out, C_in, k)
    b_cnn = u(ks[2], (C_CNN,), D_IN * 3)                # Conv1d.bias
    w_ih = u(ks[3], (4 * H_LSTM, C_CNN), H_LSTM)        # LSTM.weight_ih_l0
    w_hh = u(ks[4], (4 * H_LSTM, H_LSTM), H_LSTM)       # LSTM.weight_hh_l0
    b_ih = u(ks[5], (4 * H_LSTM,), H_LSTM)              # LSTM.bias_ih_l0
    b_hh = u(ks[6], (4 * H_LSTM,), H_LSTM)              # LSTM.bias_hh_l0
    w_fc = u(ks[7], (1, H_LSTM), H_LSTM)                # Linear.weight
    b_fc = u(ks[8], (1,), H_LSTM)                       # Linear.bias

    params = (w_cnn, b_cnn, w_ih, w_hh, b_ih, b_hh, w_fc, b_fc)

    out = jax.block_until_ready(cnn_lstm_forward(x, params))
    ref = reference_forward(x, params)
    # tolerance accounts for bf16 MXU operands + approx-reciprocal sigmoid vs f32 ref
    np.testing.assert_allclose(np.asarray(out), np.asarray(ref), rtol=2e-2, atol=2e-2)
    print("KERNEL_OK")
</pallas_src>

<mosaic_0001>
module attributes {stable_mosaic.version = 11 : i64} {
  func.func @cnn_lstm_kernel(%arg0: memref<16x24xbf16, #tpu.memory_space<vmem>>, %arg1: memref<24x32xbf16, #tpu.memory_space<vmem>>, %arg2: memref<1x32xf32, #tpu.memory_space<vmem>>, %arg3: memref<32x256xbf16, #tpu.memory_space<vmem>>, %arg4: memref<64x256xbf16, #tpu.memory_space<vmem>>, %arg5: memref<1x256xf32, #tpu.memory_space<vmem>>, %arg6: memref<64x1xf32, #tpu.memory_space<vmem>>, %arg7: memref<1x1xf32, #tpu.memory_space<vmem>>, %arg8: memref<2x1xf32, #tpu.memory_space<vmem>>) attributes {dimension_semantics = [], scalar_prefetch = 0 : i64, scratch_operands = 0 : i64, tpu.core_type = #tpu.core_type<tc>} {
    %c0 = arith.constant 0 : index
    %c0_0 = arith.constant 0 : index
    %0 = vector.load %arg0[%c0, %c0_0] : memref<16x24xbf16, #tpu.memory_space<vmem>>, vector<16x24xbf16>
    %c0_1 = arith.constant 0 : index
    %c0_2 = arith.constant 0 : index
    %1 = vector.load %arg1[%c0_1, %c0_2] : memref<24x32xbf16, #tpu.memory_space<vmem>>, vector<24x32xbf16>
    %cst = arith.constant dense<0.000000e+00> : vector<16x32xf32>
    %2 = tpu.matmul %0, %1, %cst {dimension_numbers = #tpu.dot_dimension_numbers<[1], [0], [0], [1], [0, 0, 1, 1], [], []>} : vector<16x24xbf16>, vector<24x32xbf16>, vector<16x32xf32> -> vector<16x32xf32>
    %c0_3 = arith.constant 0 : index
    %c0_4 = arith.constant 0 : index
    %3 = vector.load %arg2[%c0_3, %c0_4] : memref<1x32xf32, #tpu.memory_space<vmem>>, vector<1x32xf32>
    %4 = vector.broadcast %3 : vector<1x32xf32> to vector<16x32xf32>
    %5 = arith.addf %2, %4 : vector<16x32xf32>
    %cst_5 = arith.constant 0.000000e+00 : f32
    %6 = vector.broadcast %cst_5 : f32 to vector<16x32xf32>
    %7 = arith.maximumf %5, %6 : vector<16x32xf32>
    %8 = arith.truncf %7 : vector<16x32xf32> to vector<16x32xbf16>
    %c0_6 = arith.constant 0 : index
    %c0_7 = arith.constant 0 : index
    %9 = vector.load %arg3[%c0_6, %c0_7] : memref<32x256xbf16, #tpu.memory_space<vmem>>, vector<32x256xbf16>
    %cst_8 = arith.constant dense<0.000000e+00> : vector<16x256xf32>
    %10 = tpu.matmul %8, %9, %cst_8 {dimension_numbers = #tpu.dot_dimension_numbers<[1], [0], [0], [1], [0, 0, 1, 1], [], []>} : vector<16x32xbf16>, vector<32x256xbf16>, vector<16x256xf32> -> vector<16x256xf32>
    %c0_9 = arith.constant 0 : index
    %c0_10 = arith.constant 0 : index
    %11 = vector.load %arg5[%c0_9, %c0_10] : memref<1x256xf32, #tpu.memory_space<vmem>>, vector<1x256xf32>
    %12 = vector.broadcast %11 : vector<1x256xf32> to vector<16x256xf32>
    %13 = arith.addf %10, %12 : vector<16x256xf32>
    %c0_11 = arith.constant 0 : index
    %c0_12 = arith.constant 0 : index
    %14 = vector.load %arg4[%c0_11, %c0_12] : memref<64x256xbf16, #tpu.memory_space<vmem>>, vector<64x256xbf16>
    %cst_13 = arith.constant 0.000000e+00 : f32
    %15 = vector.broadcast %cst_13 : f32 to vector<2x64xf32>
    %cst_14 = arith.constant 0.000000e+00 : f32
    %16 = vector.broadcast %cst_14 : f32 to vector<2x64xf32>
    %17 = vector.extract_strided_slice %13 {offsets = [0, 0], sizes = [2, 256], strides = [1, 1]} : vector<16x256xf32> to vector<2x256xf32>
    %18 = arith.truncf %15 : vector<2x64xf32> to vector<2x64xbf16>
    %cst_15 = arith.constant dense<0.000000e+00> : vector<2x256xf32>
    %19 = tpu.matmul %18, %14, %cst_15 {dimension_numbers = #tpu.dot_dimension_numbers<[1], [0], [0], [1], [0, 0, 1, 1], [], []>} : vector<2x64xbf16>, vector<64x256xbf16>, vector<2x256xf32> -> vector<2x256xf32>
    %20 = arith.addf %17, %19 : vector<2x256xf32>
    %21 = vector.extract_strided_slice %20 {offsets = [0, 0], sizes = [2, 192], strides = [1, 1]} : vector<2x256xf32> to vector<2x192xf32>
    %cst_16 = arith.constant 0.000000e+00 : f32
    %22 = vector.broadcast %cst_16 : f32 to vector<2x192xf32>
    %23 = arith.subf %22, %21 : vector<2x192xf32>
    %24 = math.exp %23 : vector<2x192xf32>
    %cst_17 = arith.constant 1.000000e+00 : f32
    %25 = vector.broadcast %cst_17 : f32 to vector<2x192xf32>
    %26 = arith.addf %25, %24 : vector<2x192xf32>
    %27 = tpu.reciprocal %26 {approx = true} : vector<2x192xf32> -> vector<2x192xf32>
    %28 = vector.extract_strided_slice %20 {offsets = [0, 192], sizes = [2, 64], strides = [1, 1]} : vector<2x256xf32> to vector<2x64xf32>
    %29 = math.tanh %28 : vector<2x64xf32>
    %30 = vector.extract_strided_slice %27 {offsets = [0, 0], sizes = [2, 64], strides = [1, 1]} : vector<2x192xf32> to vector<2x64xf32>
    %31 = vector.extract_strided_slice %27 {offsets = [0, 64], sizes = [2, 64], strides = [1, 1]} : vector<2x192xf32> to vector<2x64xf32>
    %32 = vector.extract_strided_slice %27 {offsets = [0, 128], sizes = [2, 64], strides = [1, 1]} : vector<2x192xf32> to vector<2x64xf32>
    %33 = arith.mulf %31, %16 : vector<2x64xf32>
    %34 = arith.mulf %30, %29 : vector<2x64xf32>
    %35 = arith.addf %33, %34 : vector<2x64xf32>
    %36 = math.tanh %35 : vector<2x64xf32>
    %37 = arith.mulf %32, %36 : vector<2x64xf32>
    %38 = vector.extract_strided_slice %13 {offsets = [2, 0], sizes = [2, 256], strides = [1, 1]} : vector<16x256xf32> to vector<2x256xf32>
    %39 = arith.truncf %37 : vector<2x64xf32> to vector<2x64xbf16>
    %cst_18 = arith.constant dense<0.000000e+00> : vector<2x256xf32>
    %40 = tpu.matmul %39, %14, %cst_18 {dimension_numbers = #tpu.dot_dimension_numbers<[1], [0], [0], [1], [0, 0, 1, 1], [], []>} : vector<2x64xbf16>, vector<64x256xbf16>, vector<2x256xf32> -> vector<2x256xf32>
    %41 = arith.addf %38, %40 : vector<2x256xf32>
    %42 = vector.extract_strided_slice %41 {offsets = [0, 0], sizes = [2, 192], strides = [1, 1]} : vector<2x256xf32> to vector<2x192xf32>
    %cst_19 = arith.constant 0.000000e+00 : f32
    %43 = vector.broadcast %cst_19 : f32 to vector<2x192xf32>
    %44 = arith.subf %43, %42 : vector<2x192xf32>
    %45 = math.exp %44 : vector<2x192xf32>
    %cst_20 = arith.constant 1.000000e+00 : f32
    %46 = vector.broadcast %cst_20 : f32 to vector<2x192xf32>
    %47 = arith.addf %46, %45 : vector<2x192xf32>
    %48 = tpu.reciprocal %47 {approx = true} : vector<2x192xf32> -> vector<2x192xf32>
    %49 = vector.extract_strided_slice %41 {offsets = [0, 192], sizes = [2, 64], strides = [1, 1]} : vector<2x256xf32> to vector<2x64xf32>
    %50 = math.tanh %49 : vector<2x64xf32>
    %51 = vector.extract_strided_slice %48 {offsets = [0, 0], sizes = [2, 64], strides = [1, 1]} : vector<2x192xf32> to vector<2x64xf32>
    %52 = vector.extract_strided_slice %48 {offsets = [0, 64], sizes = [2, 64], strides = [1, 1]} : vector<2x192xf32> to vector<2x64xf32>
    %53 = vector.extract_strided_slice %48 {offsets = [0, 128], sizes = [2, 64], strides = [1, 1]} : vector<2x192xf32> to vector<2x64xf32>
    %54 = arith.mulf %52, %35 : vector<2x64xf32>
    %55 = arith.mulf %51, %50 : vector<2x64xf32>
    %56 = arith.addf %54, %55 : vector<2x64xf32>
    %57 = math.tanh %56 : vector<2x64xf32>
    %58 = arith.mulf %53, %57 : vector<2x64xf32>
    %59 = vector.extract_strided_slice %13 {offsets = [4, 0], sizes = [2, 256], strides = [1, 1]} : vector<16x256xf32> to vector<2x256xf32>
    %60 = arith.truncf %58 : vector<2x64xf32> to vector<2x64xbf16>
    %cst_21 = arith.constant dense<0.000000e+00> : vector<2x256xf32>
    %61 = tpu.matmul %60, %14, %cst_21 {dimension_numbers = #tpu.dot_dimension_numbers<[1], [0], [0], [1], [0, 0, 1, 1], [], []>} : vector<2x64xbf16>, vector<64x256xbf16>, vector<2x256xf32> -> vector<2x256xf32>
    %62 = arith.addf %59, %61 : vector<2x256xf32>
    %63 = vector.extract_strided_slice %62 {offsets = [0, 0], sizes = [2, 192], strides = [1, 1]} : vector<2x256xf32> to vector<2x192xf32>
    %cst_22 = arith.constant 0.000000e+00 : f32
    %64 = vector.broadcast %cst_22 : f32 to vector<2x192xf32>
    %65 = arith.subf %64, %63 : vector<2x192xf32>
    %66 = math.exp %65 : vector<2x192xf32>
    %cst_23 = arith.constant 1.000000e+00 : f32
    %67 = vector.broadcast %cst_23 : f32 to vector<2x192xf32>
    %68 = arith.addf %67, %66 : vector<2x192xf32>
    %69 = tpu.reciprocal %68 {approx = true} : vector<2x192xf32> -> vector<2x192xf32>
    %70 = vector.extract_strided_slice %62 {offsets = [0, 192], sizes = [2, 64], strides = [1, 1]} : vector<2x256xf32> to vector<2x64xf32>
    %71 = math.tanh %70 : vector<2x64xf32>
    %72 = vector.extract_strided_slice %69 {offsets = [0, 0], sizes = [2, 64], strides = [1, 1]} : vector<2x192xf32> to vector<2x64xf32>
    %73 = vector.extract_strided_slice %69 {offsets = [0, 64], sizes = [2, 64], strides = [1, 1]} : vector<2x192xf32> to vector<2x64xf32>
    %74 = vector.extract_strided_slice %69 {offsets = [0, 128], sizes = [2, 64], strides = [1, 1]} : vector<2x192xf32> to vector<2x64xf32>
    %75 = arith.mulf %73, %56 : vector<2x64xf32>
    %76 = arith.mulf %72, %71 : vector<2x64xf32>
    %77 = arith.addf %75, %76 : vector<2x64xf32>
    %78 = math.tanh %77 : vector<2x64xf32>
    %79 = arith.mulf %74, %78 : vector<2x64xf32>
    %80 = vector.extract_strided_slice %13 {offsets = [6, 0], sizes = [2, 256], strides = [1, 1]} : vector<16x256xf32> to vector<2x256xf32>
    %81 = arith.truncf %79 : vector<2x64xf32> to vector<2x64xbf16>
    %cst_24 = arith.constant dense<0.000000e+00> : vector<2x256xf32>
    %82 = tpu.matmul %81, %14, %cst_24 {dimension_numbers = #tpu.dot_dimension_numbers<[1], [0], [0], [1], [0, 0, 1, 1], [], []>} : vector<2x64xbf16>, vector<64x256xbf16>, vector<2x256xf32> -> vector<2x256xf32>
    %83 = arith.addf %80, %82 : vector<2x256xf32>
    %84 = vector.extract_strided_slice %83 {offsets = [0, 0], sizes = [2, 192], strides = [1, 1]} : vector<2x256xf32> to vector<2x192xf32>
    %cst_25 = arith.constant 0.000000e+00 : f32
    %85 = vector.broadcast %cst_25 : f32 to vector<2x192xf32>
    %86 = arith.subf %85, %84 : vector<2x192xf32>
    %87 = math.exp %86 : vector<2x192xf32>
    %cst_26 = arith.constant 1.000000e+00 : f32
    %88 = vector.broadcast %cst_26 : f32 to vector<2x192xf32>
    %89 = arith.addf %88, %87 : vector<2x192xf32>
    %90 = tpu.reciprocal %89 {approx = true} : vector<2x192xf32> -> vector<2x192xf32>
    %91 = vector.extract_strided_slice %83 {offsets = [0, 192], sizes = [2, 64], strides = [1, 1]} : vector<2x256xf32> to vector<2x64xf32>
    %92 = math.tanh %91 : vector<2x64xf32>
    %93 = vector.extract_strided_slice %90 {offsets = [0, 0], sizes = [2, 64], strides = [1, 1]} : vector<2x192xf32> to vector<2x64xf32>
    %94 = vector.extract_strided_slice %90 {offsets = [0, 64], sizes = [2, 64], strides = [1, 1]} : vector<2x192xf32> to vector<2x64xf32>
    %95 = vector.extract_strided_slice %90 {offsets = [0, 128], sizes = [2, 64], strides = [1, 1]} : vector<2x192xf32> to vector<2x64xf32>
    %96 = arith.mulf %94, %77 : vector<2x64xf32>
    %97 = arith.mulf %93, %92 : vector<2x64xf32>
    %98 = arith.addf %96, %97 : vector<2x64xf32>
    %99 = math.tanh %98 : vector<2x64xf32>
    %100 = arith.mulf %95, %99 : vector<2x64xf32>
    %101 = vector.extract_strided_slice %13 {offsets = [8, 0], sizes = [2, 256], strides = [1, 1]} : vector<16x256xf32> to vector<2x256xf32>
    %102 = arith.truncf %100 : vector<2x64xf32> to vector<2x64xbf16>
    %cst_27 = arith.constant dense<0.000000e+00> : vector<2x256xf32>
    %103 = tpu.matmul %102, %14, %cst_27 {dimension_numbers = #tpu.dot_dimension_numbers<[1], [0], [0], [1], [0, 0, 1, 1], [], []>} : vector<2x64xbf16>, vector<64x256xbf16>, vector<2x256xf32> -> vector<2x256xf32>
    %104 = arith.addf %101, %103 : vector<2x256xf32>
    %105 = vector.extract_strided_slice %104 {offsets = [0, 0], sizes = [2, 192], strides = [1, 1]} : vector<2x256xf32> to vector<2x192xf32>
    %cst_28 = arith.constant 0.000000e+00 : f32
    %106 = vector.broadcast %cst_28 : f32 to vector<2x192xf32>
    %107 = arith.subf %106, %105 : vector<2x192xf32>
    %108 = math.exp %107 : vector<2x192xf32>
    %cst_29 = arith.constant 1.000000e+00 : f32
    %109 = vector.broadcast %cst_29 : f32 to vector<2x192xf32>
    %110 = arith.addf %109, %108 : vector<2x192xf32>
    %111 = tpu.reciprocal %110 {approx = true} : vector<2x192xf32> -> vector<2x192xf32>
    %112 = vector.extract_strided_slice %104 {offsets = [0, 192], sizes = [2, 64], strides = [1, 1]} : vector<2x256xf32> to vector<2x64xf32>
    %113 = math.tanh %112 : vector<2x64xf32>
    %114 = vector.extract_strided_slice %111 {offsets = [0, 0], sizes = [2, 64], strides = [1, 1]} : vector<2x192xf32> to vector<2x64xf32>
    %115 = vector.extract_strided_slice %111 {offsets = [0, 64], sizes = [2, 64], strides = [1, 1]} : vector<2x192xf32> to vector<2x64xf32>
    %116 = vector.extract_strided_slice %111 {offsets = [0, 128], sizes = [2, 64], strides = [1, 1]} : vector<2x192xf32> to vector<2x64xf32>
    %117 = arith.mulf %115, %98 : vector<2x64xf32>
    %118 = arith.mulf %114, %113 : vector<2x64xf32>
    %119 = arith.addf %117, %118 : vector<2x64xf32>
    %120 = math.tanh %119 : vector<2x64xf32>
    %121 = arith.mulf %116, %120 : vector<2x64xf32>
    %122 = vector.extract_strided_slice %13 {offsets = [10, 0], sizes = [2, 256], strides = [1, 1]} : vector<16x256xf32> to vector<2x256xf32>
    %123 = arith.truncf %121 : vector<2x64xf32> to vector<2x64xbf16>
    %cst_30 = arith.constant dense<0.000000e+00> : vector<2x256xf32>
    %124 = tpu.matmul %123, %14, %cst_30 {dimension_numbers = #tpu.dot_dimension_numbers<[1], [0], [0], [1], [0, 0, 1, 1], [], []>} : vector<2x64xbf16>, vector<64x256xbf16>, vector<2x256xf32> -> vector<2x256xf32>
    %125 = arith.addf %122, %124 : vector<2x256xf32>
    %126 = vector.extract_strided_slice %125 {offsets = [0, 0], sizes = [2, 192], strides = [1, 1]} : vector<2x256xf32> to vector<2x192xf32>
    %cst_31 = arith.constant 0.000000e+00 : f32
    %127 = vector.broadcast %cst_31 : f32 to vector<2x192xf32>
    %128 = arith.subf %127, %126 : vector<2x192xf32>
    %129 = math.exp %128 : vector<2x192xf32>
    %cst_32 = arith.constant 1.000000e+00 : f32
    %130 = vector.broadcast %cst_32 : f32 to vector<2x192xf32>
    %131 = arith.addf %130, %129 : vector<2x192xf32>
    %132 = tpu.reciprocal %131 {approx = true} : vector<2x192xf32> -> vector<2x192xf32>
    %133 = vector.extract_strided_slice %125 {offsets = [0, 192], sizes = [2, 64], strides = [1, 1]} : vector<2x256xf32> to vector<2x64xf32>
    %134 = math.tanh %133 : vector<2x64xf32>
    %135 = vector.extract_strided_slice %132 {offsets = [0, 0], sizes = [2, 64], strides = [1, 1]} : vector<2x192xf32> to vector<2x64xf32>
    %136 = vector.extract_strided_slice %132 {offsets = [0, 64], sizes = [2, 64], strides = [1, 1]} : vector<2x192xf32> to vector<2x64xf32>
    %137 = vector.extract_strided_slice %132 {offsets = [0, 128], sizes = [2, 64], strides = [1, 1]} : vector<2x192xf32> to vector<2x64xf32>
    %138 = arith.mulf %136, %119 : vector<2x64xf32>
    %139 = arith.mulf %135, %134 : vector<2x64xf32>
    %140 = arith.addf %138, %139 : vector<2x64xf32>
    %141 = math.tanh %140 : vector<2x64xf32>
    %142 = arith.mulf %137, %141 : vector<2x64xf32>
    %143 = vector.extract_strided_slice %13 {offsets = [12, 0], sizes = [2, 256], strides = [1, 1]} : vector<16x256xf32> to vector<2x256xf32>
    %144 = arith.truncf %142 : vector<2x64xf32> to vector<2x64xbf16>
    %cst_33 = arith.constant dense<0.000000e+00> : vector<2x256xf32>
    %145 = tpu.matmul %144, %14, %cst_33 {dimension_numbers = #tpu.dot_dimension_numbers<[1], [0], [0], [1], [0, 0, 1, 1], [], []>} : vector<2x64xbf16>, vector<64x256xbf16>, vector<2x256xf32> -> vector<2x256xf32>
    %146 = arith.addf %143, %145 : vector<2x256xf32>
    %147 = vector.extract_strided_slice %146 {offsets = [0, 0], sizes = [2, 192], strides = [1, 1]} : vector<2x256xf32> to vector<2x192xf32>
    %cst_34 = arith.constant 0.000000e+00 : f32
    %148 = vector.broadcast %cst_34 : f32 to vector<2x192xf32>
    %149 = arith.subf %148, %147 : vector<2x192xf32>
    %150 = math.exp %149 : vector<2x192xf32>
    %cst_35 = arith.constant 1.000000e+00 : f32
    %151 = vector.broadcast %cst_35 : f32 to vector<2x192xf32>
    %152 = arith.addf %151, %150 : vector<2x192xf32>
    %153 = tpu.reciprocal %152 {approx = true} : vector<2x192xf32> -> vector<2x192xf32>
    %154 = vector.extract_strided_slice %146 {offsets = [0, 192], sizes = [2, 64], strides = [1, 1]} : vector<2x256xf32> to vector<2x64xf32>
    %155 = math.tanh %154 : vector<2x64xf32>
    %156 = vector.extract_strided_slice %153 {offsets = [0, 0], sizes = [2, 64], strides = [1, 1]} : vector<2x192xf32> to vector<2x64xf32>
    %157 = vector.extract_strided_slice %153 {offsets = [0, 64], sizes = [2, 64], strides = [1, 1]} : vector<2x192xf32> to vector<2x64xf32>
    %158 = vector.extract_strided_slice %153 {offsets = [0, 128], sizes = [2, 64], strides = [1, 1]} : vector<2x192xf32> to vector<2x64xf32>
    %159 = arith.mulf %157, %140 : vector<2x64xf32>
    %160 = arith.mulf %156, %155 : vector<2x64xf32>
    %161 = arith.addf %159, %160 : vector<2x64xf32>
    %162 = math.tanh %161 : vector<2x64xf32>
    %163 = arith.mulf %158, %162 : vector<2x64xf32>
    %164 = vector.extract_strided_slice %13 {offsets = [14, 0], sizes = [2, 256], strides = [1, 1]} : vector<16x256xf32> to vector<2x256xf32>
    %165 = arith.truncf %163 : vector<2x64xf32> to vector<2x64xbf16>
    %cst_36 = arith.constant dense<0.000000e+00> : vector<2x256xf32>
    %166 = tpu.matmul %165, %14, %cst_36 {dimension_numbers = #tpu.dot_dimension_numbers<[1], [0], [0], [1], [0, 0, 1, 1], [], []>} : vector<2x64xbf16>, vector<64x256xbf16>, vector<2x256xf32> -> vector<2x256xf32>
    %167 = arith.addf %164, %166 : vector<2x256xf32>
    %168 = vector.extract_strided_slice %167 {offsets = [0, 0], sizes = [2, 192], strides = [1, 1]} : vector<2x256xf32> to vector<2x192xf32>
    %cst_37 = arith.constant 0.000000e+00 : f32
    %169 = vector.broadcast %cst_37 : f32 to vector<2x192xf32>
    %170 = arith.subf %169, %168 : vector<2x192xf32>
    %171 = math.exp %170 : vector<2x192xf32>
    %cst_38 = arith.constant 1.000000e+00 : f32
    %172 = vector.broadcast %cst_38 : f32 to vector<2x192xf32>
    %173 = arith.addf %172, %171 : vector<2x192xf32>
    %174 = tpu.reciprocal %173 {approx = true} : vector<2x192xf32> -> vector<2x192xf32>
    %175 = vector.extract_strided_slice %167 {offsets = [0, 192], sizes = [2, 64], strides = [1, 1]} : vector<2x256xf32> to vector<2x64xf32>
    %176 = math.tanh %175 : vector<2x64xf32>
    %177 = vector.extract_strided_slice %174 {offsets = [0, 0], sizes = [2, 64], strides = [1, 1]} : vector<2x192xf32> to vector<2x64xf32>
    %178 = vector.extract_strided_slice %174 {offsets = [0, 64], sizes = [2, 64], strides = [1, 1]} : vector<2x192xf32> to vector<2x64xf32>
    %179 = vector.extract_strided_slice %174 {offsets = [0, 128], sizes = [2, 64], strides = [1, 1]} : vector<2x192xf32> to vector<2x64xf32>
    %180 = arith.mulf %178, %161 : vector<2x64xf32>
    %181 = arith.mulf %177, %176 : vector<2x64xf32>
    %182 = arith.addf %180, %181 : vector<2x64xf32>
    %183 = math.tanh %182 : vector<2x64xf32>
    %184 = arith.mulf %179, %183 : vector<2x64xf32>
    %c0_39 = arith.constant 0 : index
    %c0_40 = arith.constant 0 : index
    %185 = vector.load %arg6[%c0_39, %c0_40] : memref<64x1xf32, #tpu.memory_space<vmem>>, vector<64x1xf32>
    %cst_41 = arith.constant dense<0.000000e+00> : vector<2x1xf32>
    %186 = tpu.matmul %184, %185, %cst_41 {dimension_numbers = #tpu.dot_dimension_numbers<[1], [0], [0], [1], [0, 0, 1, 1], [], []>} : vector<2x64xf32>, vector<64x1xf32>, vector<2x1xf32> -> vector<2x1xf32>
    %c0_42 = arith.constant 0 : index
    %c0_43 = arith.constant 0 : index
    %187 = vector.load %arg7[%c0_42, %c0_43] : memref<1x1xf32, #tpu.memory_space<vmem>>, vector<1x1xf32>
    %188 = vector.broadcast %187 : vector<1x1xf32> to vector<2x1xf32>
    %189 = arith.addf %186, %188 : vector<2x1xf32>
    %c0_44 = arith.constant 0 : index
    %c0_45 = arith.constant 0 : index
    %190 = vector.load %arg8[%c0_44, %c0_45] : memref<2x1xf32, #tpu.memory_space<vmem>>, vector<2x1xf32>
    tpu.vector_store %arg8[%c0_44, %c0_45], %189 {strides = array<i32>} : memref<2x1xf32, #tpu.memory_space<vmem>>, vector<2x1xf32>,
    return
  }
}

</mosaic_0001>

<llo_original>
// kernel: tpu_custom_call.1
$region0: #{tpu_custom_call.1}
  #allocation0 [shape = 'u32[]', space=smem, size = 0x4, offset = 0x4, fixed_abs, tag = 'smem constant byte address 0x4 - core index']
  #allocation1 [shape = 'u32[72,128]{1,0:T(1,128)}', space=vmem, size = 0x9000, scoped, tag = 'internal scratch']
  #allocation2 [shape = 'f32[1,1]{1,0:T(1,128)S(1)}', space=vmem, size = 0x200, scoped, tag = 'scoped memory for tpu_custom_call.1']
  %s0 = inlined_call_operand.hbm [shape: bf16[16,24], index: 0, kind: input, shape index: {}]
  %s1 = inlined_call_operand.hbm [shape: bf16[24,32], index: 1, kind: input, shape index: {}]
  %s2 = inlined_call_operand.vmem [shape: f32[1,32], index: 2, kind: input, shape index: {}]
  %s3 = inlined_call_operand.hbm [shape: bf16[32,256], index: 3, kind: input, shape index: {}]
  %s4 = inlined_call_operand.vmem [shape: bf16[64,256], index: 4, kind: input, shape index: {}]
  %s5 = inlined_call_operand.vmem [shape: f32[1,256], index: 5, kind: input, shape index: {}]
  %s6 = inlined_call_operand.vmem [shape: f32[64,1], index: 6, kind: input, shape index: {}]
  %s7 = inlined_call_operand.<no memory space> [shape: f32[1,1], index: 7, kind: input, shape index: {}]
  %s8 = inlined_call_operand.vmem [shape: f32[2,1], index: 8, kind: output, shape index: {}]
  %s9 = sld [smem:[#allocation0]]
  $region54: #{tpu_custom_call.1} parent=0
    _
  %s11 = ssub.s32 1, %s9
  %s12 = scalar_select 0, %s11, %s9
  %v13 = vstv %s7
  %14 = vst [vmem:[#allocation2] sm:$0x1] %v13
  $region1: #{tpu_custom_call.1} parent=0
    #allocation3 [shape = 'u8[4096]{0}', space=vmem, size = 0x1000, scoped, tag = 'input window, operand 0, single buffered']
    #allocation4 [shape = 's32[1]{0}', space=sflag, size = 0x4, scoped, tag = 'scoped memory for tpu_custom_call.1']
    #allocation5 [shape = 'u8[6144]{0}', space=vmem, size = 0x1800, scoped, tag = 'input window, operand 1, single buffered']
    #allocation6 [shape = 's32[1]{0}', space=sflag, size = 0x4, scoped, tag = 'scoped memory for tpu_custom_call.1']
    #allocation7 [shape = 'u8[16384]{0}', space=vmem, size = 0x4000, scoped, tag = 'input window, operand 3, single buffered']
    %15 = vsyncpa [#allocation4], 0
    %16 = vsyncpa [#allocation6], 0
    // Predicated region
    $region2: #{tpu_custom_call.1} parent=1 // pred_check
      _
    $region3: #{tpu_custom_call.1} parent=1 // pred_check_branch
      %18 = sbr.rel (0) target = $region5
    $region4: #{tpu_custom_call.1} parent=1 // pred_region
      %20 = vsyncadd [#allocation4], 0
      %s21 = sshll.u32 %s0, 4
      %s22 = int_to_ptr.hbm [resolvable:$true] %s21
      %s23 = sshll.u32 [#allocation3], 4
      %s24 = int_to_ptr.vmem [resolvable:$true] %s23
      %29 = dma.hbm_to_vmem [thread:$0]  %s22, 128, %s24, [#allocation4], 64, 64, 4
    $region5: #{tpu_custom_call.1} parent=1 // pred_fallthru
      _
    // Predicated region
    $region6: #{tpu_custom_call.1} parent=1 // pred_check
      _
    $region7: #{tpu_custom_call.1} parent=1 // pred_check_branch
      %31 = sbr.rel (0) target = $region9
    $region8: #{tpu_custom_call.1} parent=1 // pred_region
      %33 = vsyncadd [#allocation6], 0
      %s34 = sshll.u32 %s1, 4
      %s35 = int_to_ptr.hbm [resolvable:$true] %s34
      %s36 = sshll.u32 [#allocation5], 4
      %s37 = int_to_ptr.vmem [resolvable:$true] %s36
      %42 = dma.hbm_to_vmem [thread:$0]  %s35, 192, %s37, [#allocation6], 64, 64, 4
    $region9: #{tpu_custom_call.1} parent=1 // pred_fallthru
      _
    // Predicated region
    $region10: #{tpu_custom_call.1} parent=1 // pred_check
      _
    $region11: #{tpu_custom_call.1} parent=1 // pred_check_branch
      %44 = sbr.rel (0) target = $region13
    $region12: #{tpu_custom_call.1} parent=1 // pred_region
      _
    $region13: #{tpu_custom_call.1} parent=1 // pred_fallthru
      _
    // Predicated region
    $region14: #{tpu_custom_call.1} parent=1 // pred_check
      _
    $region15: #{tpu_custom_call.1} parent=1 // pred_check_branch
      %46 = sbr.rel (0) target = $region17
    $region16: #{tpu_custom_call.1} parent=1 // pred_region
      %48 = vsyncadd [#allocation6], 0
      %s49 = sshll.u32 %s3, 4
      %s50 = int_to_ptr.hbm [resolvable:$true] %s49
      %s51 = sshll.u32 [#allocation7], 4
      %s52 = int_to_ptr.vmem [resolvable:$true] %s51
      %57 = dma.hbm_to_vmem [thread:$0]  %s50, 512, %s52, [#allocation6], 128, 128, 8
    $region17: #{tpu_custom_call.1} parent=1 // pred_fallthru
      _
    // Predicated region
    $region18: #{tpu_custom_call.1} parent=1 // pred_check
      _
    $region19: #{tpu_custom_call.1} parent=1 // pred_check_branch
      %59 = sbr.rel (0) target = $region21
    $region20: #{tpu_custom_call.1} parent=1 // pred_region
      _
    $region21: #{tpu_custom_call.1} parent=1 // pred_fallthru
      _
    // Predicated region
    $region22: #{tpu_custom_call.1} parent=1 // pred_check
      _
    $region23: #{tpu_custom_call.1} parent=1 // pred_check_branch
      %61 = sbr.rel (0) target = $region25
    $region24: #{tpu_custom_call.1} parent=1 // pred_region
      _
    $region25: #{tpu_custom_call.1} parent=1 // pred_fallthru
      _
    // Predicated region
    $region26: #{tpu_custom_call.1} parent=1 // pred_check
      _
    $region27: #{tpu_custom_call.1} parent=1 // pred_check_branch
      %63 = sbr.rel (0) target = $region29
    $region28: #{tpu_custom_call.1} parent=1 // pred_region
      _
    $region29: #{tpu_custom_call.1} parent=1 // pred_fallthru
      _
    // Predicated region
    $region30: #{tpu_custom_call.1} parent=1 // pred_check
      _
    $region31: #{tpu_custom_call.1} parent=1 // pred_check_branch
      %65 = sbr.rel (0) target = $region33
    $region32: #{tpu_custom_call.1} parent=1 // pred_region
      _
    $region33: #{tpu_custom_call.1} parent=1 // pred_fallthru
      _
    // Predicated region
    $region34: #{tpu_custom_call.1} parent=1 // pred_check
      _
    $region35: #{tpu_custom_call.1} parent=1 // pred_check_branch
      %67 = sbr.rel (0) target = $region37
    $region36: #{tpu_custom_call.1} parent=1 // pred_region
      %69 = dma.done [#allocation4], 128
    $region37: #{tpu_custom_call.1} parent=1 // pred_fallthru
      _
    // Predicated region
    $region38: #{tpu_custom_call.1} parent=1 // pred_check
      _
    $region39: #{tpu_custom_call.1} parent=1 // pred_check_branch
      %71 = sbr.rel (0) target = $region41
    $region40: #{tpu_custom_call.1} parent=1 // pred_region
      %73 = dma.done [#allocation6], 192
    $region41: #{tpu_custom_call.1} parent=1 // pred_fallthru
      _
    // Predicated region
    $region42: #{tpu_custom_call.1} parent=1 // pred_check
      _
    $region43: #{tpu_custom_call.1} parent=1 // pred_check_branch
      %75 = sbr.rel (0) target = $region45
    $region44: #{tpu_custom_call.1} parent=1 // pred_region
      %77 = dma.done [#allocation6], 512
    $region45: #{tpu_custom_call.1} parent=1 // pred_fallthru
      _
    %v79 = vld [vmem:[#allocation3] sm:$0xf]
    %v80 = vld [vmem:[#allocation3 + $0x4] sm:$0xf]
    %v81 = vld [vmem:[#allocation5] sm:$0xf]
    %v82 = vld [vmem:[#allocation5 + $0x4] sm:$0xf]
    %v83 = vld [vmem:[#allocation5 + $0x8] sm:$0xf]
    %v84 = vld [vmem:[%s2] sm:$0x1]
    %v86 = vperm.slane %v84, 0
    %v90 = vunpack.c.l.b16 %v79
    %v91 = vunpack.c.l.b16 %v80
    %v92 = vpack.c.b16 %v91, %v90
    %v96 = vunpack.c.l.b16 %v81
    %v97 = vunpack.c.l.b16 %v82
    %v98 = vunpack.c.l.b16 %v83
    %v99 = vpack.c.b16 %v97, %v96
    %v100 = vpack.c.b16 %v98, %v98
    %vm102 = vcmask 195584
    %v104 = vsel %vm102, %v92, 0
    %vm106 = vcmask 1043456
    %v108 = vsel %vm106, %v100, 0
    %110 = vmatpush.bf16.msra.mxu0 0
    %111 = vmatpush.bf16.msra.mxu0 0
    %112 = vmatpush.bf16.msra.mxu0 0
    %113 = vmatpush.bf16.msra.mxu0 0
    %114 = vmatpush.bf16.msra.mxu0 0
    %115 = vmatpush.bf16.msra.mxu0 0
    %116 = vmatpush.bf16.msra.mxu0 %v108
    %117 = vmatpush.bf16.msra.mxu0 %v99
    %118 = vmatmul.bf16.gmra.mxu0 %v104
    %v119 = vpop.f32.mrf.mxu0
    %v120 = vadd.f32 %v86, %v119
    %v121 = vpop.f32.mrf.mxu0
    %v122 = vadd.f32 %v86, %v121
    %123 = vdwg.mxu0
    %v124 = vmax.f32 %v120, 0.0
    %v125 = vmax.f32 %v122, 0.0
    %v126 = vpack.c.bf16 %v125, %v124
    %v127 = vld [vmem:[#allocation7] sm:$0xff]
    %v128 = vld [vmem:[#allocation7 + $0x8] sm:$0xff]
    %v129 = vld [vmem:[#allocation7 + $0x10] sm:$0xff]
    %v130 = vld [vmem:[#allocation7 + $0x18] sm:$0xff]
    %v131 = vld [vmem:[%s5] sm:$0x3]
    %v133 = vperm.slane %v131, 0
    %v134 = vperm.slane %v131, 1
    %v141 = vunpack.c.l.b16 %v127
    %v142 = vunpack.c.h.b16 %v127
    %v143 = vunpack.c.l.b16 %v128
    %v144 = vunpack.c.h.b16 %v128
    %v145 = vunpack.c.l.b16 %v129
    %v146 = vunpack.c.h.b16 %v129
    %v147 = vunpack.c.l.b16 %v130
    %v148 = vunpack.c.h.b16 %v130
    %v149 = vpack.c.b16 %v143, %v141
    %v150 = vpack.c.b16 %v144, %v142
    %v151 = vpack.c.b16 %v147, %v145
    %v152 = vpack.c.b16 %v148, %v146
    %vm157 = vcmask 261120
    %v159 = vsel %vm157, %v126, 0
    %161 = vmatpush.bf16.msra.mxu0 0
    %162 = vmatpush.bf16.msra.mxu0 0
    %163 = vmatpush.bf16.msra.mxu0 0
    %164 = vmatpush.bf16.msra.mxu0 0
    %165 = vmatpush.bf16.msra.mxu0 0
    %166 = vmatpush.bf16.msra.mxu0 0
    %167 = vmatpush.bf16.msra.mxu0 %v151
    %168 = vmatpush.bf16.msra.mxu0 %v149
    %169 = vmatmul.bf16.gmra.mxu0 %v159
    %v170 = vpop.f32.mrf.mxu0
    %v171 = vadd.f32 %v133, %v170
    %v172 = vpop.f32.mrf.mxu0
    %v173 = vadd.f32 %v133, %v172
    %174 = vdwg.mxu0
    %175 = vmatpush.bf16.msra.mxu0 0
    %176 = vmatpush.bf16.msra.mxu0 0
    %177 = vmatpush.bf16.msra.mxu0 0
    %178 = vmatpush.bf16.msra.mxu0 0
    %179 = vmatpush.bf16.msra.mxu0 0
    %180 = vmatpush.bf16.msra.mxu0 0
    %181 = vmatpush.bf16.msra.mxu0 %v152
    %182 = vmatpush.bf16.msra.mxu0 %v150
    %183 = vmatmul.bf16.gmra.mxu0 %v159
    %v184 = vpop.f32.mrf.mxu0
    %v185 = vadd.f32 %v134, %v184
    %v186 = vpop.f32.mrf.mxu0
    %v187 = vadd.f32 %v134, %v186
    %188 = vdwg.mxu0
    %v189 = vld [vmem:[%s4] sm:$0xff]
    %v190 = vld [vmem:[%s4 + $0x8] sm:$0xff]
    %v191 = vld [vmem:[%s4 + $0x10] sm:$0xff]
    %v192 = vld [vmem:[%s4 + $0x18] sm:$0xff]
    %v193 = vld [vmem:[%s4 + $0x20] sm:$0xff]
    %v194 = vld [vmem:[%s4 + $0x28] sm:$0xff]
    %v195 = vld [vmem:[%s4 + $0x30] sm:$0xff]
    %v196 = vld [vmem:[%s4 + $0x38] sm:$0xff]
    %v205 = vunpack.c.l.b16 %v189
    %v206 = vunpack.c.h.b16 %v189
    %v207 = vunpack.c.l.b16 %v190
    %v208 = vunpack.c.h.b16 %v190
    %v209 = vunpack.c.l.b16 %v191
    %v210 = vunpack.c.h.b16 %v191
    %v211 = vunpack.c.l.b16 %v192
    %v212 = vunpack.c.h.b16 %v192
    %v213 = vunpack.c.l.b16 %v193
    %v214 = vunpack.c.h.b16 %v193
    %v215 = vunpack.c.l.b16 %v194
    %v216 = vunpack.c.h.b16 %v194
    %v217 = vunpack.c.l.b16 %v195
    %v218 = vunpack.c.h.b16 %v195
    %v219 = vunpack.c.l.b16 %v196
    %v220 = vunpack.c.h.b16 %v196
    %v221 = vpack.c.b16 %v207, %v205
    %v222 = vpack.c.b16 %v208, %v206
    %v223 = vpack.c.b16 %v211, %v209
    %v224 = vpack.c.b16 %v212, %v210
    %v225 = vpack.c.b16 %v215, %v213
    %v226 = vpack.c.b16 %v216, %v214
    %v227 = vpack.c.b16 %v219, %v217
    %v228 = vpack.c.b16 %v220, %v218
    %vm237 = vcmask 523264
    %v239 = vsel %vm237, 0, 0
    %241 = vmatpush.bf16.msra.mxu0 0
    %242 = vmatpush.bf16.msra.mxu0 0
    %243 = vmatpush.bf16.msra.mxu0 0
    %244 = vmatpush.bf16.msra.mxu0 0
    %245 = vmatpush.bf16.msra.mxu0 %v227
    %246 = vmatpush.bf16.msra.mxu0 %v225
    %247 = vmatpush.bf16.msra.mxu0 %v223
    %248 = vmatpush.bf16.msra.mxu0 %v221
    %249 = vmatmul.bf16.gmra.mxu0 %v239
    %v250 = vpop.f32.mrf.mxu0
    %v251 = vadd.f32 0.0, %v250
    %v252 = vpop.f32.mrf.mxu0
    %253 = vdwg.mxu0
    %254 = vmatpush.bf16.msra.mxu0 0
    %255 = vmatpush.bf16.msra.mxu0 0
    %256 = vmatpush.bf16.msra.mxu0 0
    %257 = vmatpush.bf16.msra.mxu0 0
    %258 = vmatpush.bf16.msra.mxu0 %v228
    %259 = vmatpush.bf16.msra.mxu0 %v226
    %260 = vmatpush.bf16.msra.mxu0 %v224
    %261 = vmatpush.bf16.msra.mxu0 %v222
    %262 = vmatmul.bf16.gmra.mxu0 %v239
    %v263 = vpop.f32.mrf.mxu0
    %v264 = vadd.f32 0.0, %v263
    %v265 = vpop.f32.mrf.mxu0
    %266 = vdwg.mxu0
    %v267 = vadd.f32 %v171, %v251
    %v268 = vadd.f32 %v185, %v264
    %v269 = vsub.f32 0.0, %v267
    %v270 = vsub.f32 0.0, %v268
    %v271 = vmul.f32 %v269, 1.442695
    %v272 = vpow.pop %v271
    %v273 = vmul.f32 %v270, 1.442695
    %v274 = vpow.pop %v273
    %v275 = vadd.f32 %v272, 1.0
    %v276 = vadd.f32 %v274, 1.0
    %v277 = vrcp.pop %v275
    %v278 = vrcp.pop %v276
    %v279 = vtanh.pop %v268
    %v280 = vmul.f32 %v277, 0.0
    %282 = vrot.lane.b32.xlu0 %v279, 64
    %v283 = vpop.permute.xlu0 %282
    %v285 = vmul.f32 %v277, %v283
    %287 = vrot.lane.b32.xlu0 %v285, 64
    %v288 = vpop.permute.xlu0 %287
    %v290 = vadd.f32 %v280, %v288
    %v291 = vtanh.pop %v290
    %293 = vrot.lane.b32.xlu0 %v291, 64
    %v294 = vpop.permute.xlu0 %293
    %v296 = vmul.f32 %v278, %v294
    %v297 = vpack.c.bf16 %v296, %v296
    %v299 = vsel %vm237, %v297, 0
    %301 = vmatpush.bf16.msra.mxu0 0
    %302 = vmatpush.bf16.msra.mxu0 0
    %303 = vmatpush.bf16.msra.mxu0 0
    %304 = vmatpush.bf16.msra.mxu0 0
    %305 = vmatpush.bf16.msra.mxu0 %v227
    %306 = vmatpush.bf16.msra.mxu0 %v225
    %307 = vmatpush.bf16.msra.mxu0 %v223
    %308 = vmatpush.bf16.msra.mxu0 %v221
    %309 = vmatmul.bf16.gmra.mxu0 %v299
    %v310 = vpop.f32.mrf.mxu0
    %v311 = vadd.f32 0.0, %v310
    %v312 = vpop.f32.mrf.mxu0
    %313 = vdwg.mxu0
    %314 = vmatpush.bf16.msra.mxu0 0
    %315 = vmatpush.bf16.msra.mxu0 0
    %316 = vmatpush.bf16.msra.mxu0 0
    %317 = vmatpush.bf16.msra.mxu0 0
    %318 = vmatpush.bf16.msra.mxu0 %v228
    %319 = vmatpush.bf16.msra.mxu0 %v226
    %320 = vmatpush.bf16.msra.mxu0 %v224
    %321 = vmatpush.bf16.msra.mxu0 %v222
    %322 = vmatmul.bf16.gmra.mxu0 %v299
    %v323 = vpop.f32.mrf.mxu0
    %v324 = vadd.f32 0.0, %v323
    %v325 = vpop.f32.mrf.mxu0
    %326 = vdwg.mxu0
    %v329 = vrot.slane %v311, 6
    %v330 = vrot.slane %v324, 6
    %v333 = vadd.f32 %v171, %v329
    %v334 = vadd.f32 %v185, %v330
    %v335 = vsub.f32 0.0, %v333
    %v336 = vsub.f32 0.0, %v334
    %v337 = vmul.f32 %v335, 1.442695
    %v338 = vpow.pop %v337
    %v339 = vmul.f32 %v336, 1.442695
    %v340 = vpow.pop %v339
    %v341 = vadd.f32 %v338, 1.0
    %v342 = vadd.f32 %v340, 1.0
    %v343 = vrcp.pop %v341
    %v344 = vrcp.pop %v342
    %v345 = vtanh.pop %v334
    %v347 = vrot.slane %v290, 6
    %v349 = vmul.f32 %v343, %v347
    %351 = vrot.lane.b32.xlu0 %v345, 64
    %v352 = vpop.permute.xlu0 %351
    %v354 = vmul.f32 %v343, %v352
    %356 = vrot.lane.b32.xlu0 %v354, 64
    %v357 = vpop.permute.xlu0 %356
    %v359 = vadd.f32 %v349, %v357
    %v360 = vtanh.pop %v359
    %362 = vrot.lane.b32.xlu0 %v360, 64
    %v363 = vpop.permute.xlu0 %362
    %v365 = vmul.f32 %v344, %v363
    %v366 = vpack.c.bf16 %v365, %v365
    %v368 = vrot.slane %v366, 1
    %v370 = vsel %vm237, %v368, 0
    %372 = vmatpush.bf16.msra.mxu0 0
    %373 = vmatpush.bf16.msra.mxu0 0
    %374 = vmatpush.bf16.msra.mxu0 0
    %375 = vmatpush.bf16.msra.mxu0 0
    %376 = vmatpush.bf16.msra.mxu0 %v227
    %377 = vmatpush.bf16.msra.mxu0 %v225
    %378 = vmatpush.bf16.msra.mxu0 %v223
    %379 = vmatpush.bf16.msra.mxu0 %v221
    %380 = vmatmul.bf16.gmra.mxu0 %v370
    %v381 = vpop.f32.mrf.mxu0
    %v382 = vadd.f32 0.0, %v381
    %v383 = vpop.f32.mrf.mxu0
    %384 = vdwg.mxu0
    %385 = vmatpush.bf16.msra.mxu0 0
    %386 = vmatpush.bf16.msra.mxu0 0
    %387 = vmatpush.bf16.msra.mxu0 0
    %388 = vmatpush.bf16.msra.mxu0 0
    %389 = vmatpush.bf16.msra.mxu0 %v228
    %390 = vmatpush.bf16.msra.mxu0 %v226
    %391 = vmatpush.bf16.msra.mxu0 %v224
    %392 = vmatpush.bf16.msra.mxu0 %v222
    %393 = vmatmul.bf16.gmra.mxu0 %v370
    %v394 = vpop.f32.mrf.mxu0
    %v395 = vadd.f32 0.0, %v394
    %v396 = vpop.f32.mrf.mxu0
    %397 = vdwg.mxu0
    %v400 = vrot.slane %v382, 4
    %v401 = vrot.slane %v395, 4
    %v404 = vadd.f32 %v171, %v400
    %v405 = vadd.f32 %v185, %v401
    %v406 = vsub.f32 0.0, %v404
    %v407 = vsub.f32 0.0, %v405
    %v408 = vmul.f32 %v406, 1.442695
    %v409 = vpow.pop %v408
    %v410 = vmul.f32 %v407, 1.442695
    %v411 = vpow.pop %v410
    %v412 = vadd.f32 %v409, 1.0
    %v413 = vadd.f32 %v411, 1.0
    %v414 = vrcp.pop %v412
    %v415 = vrcp.pop %v413
    %v416 = vtanh.pop %v405
    %v418 = vrot.slane %v359, 6
    %v420 = vmul.f32 %v414, %v418
    %422 = vrot.lane.b32.xlu0 %v416, 64
    %v423 = vpop.permute.xlu0 %422
    %v425 = vmul.f32 %v414, %v423
    %427 = vrot.lane.b32.xlu0 %v425, 64
    %v428 = vpop.permute.xlu0 %427
    %v430 = vadd.f32 %v420, %v428
    %v431 = vtanh.pop %v430
    %433 = vrot.lane.b32.xlu0 %v431, 64
    %v434 = vpop.permute.xlu0 %433
    %v436 = vmul.f32 %v415, %v434
    %v437 = vpack.c.bf16 %v436, %v436
    %v439 = vrot.slane %v437, 2
    %v441 = vsel %vm237, %v439, 0
    %443 = vmatpush.bf16.msra.mxu0 0
    %444 = vmatpush.bf16.msra.mxu0 0
    %445 = vmatpush.bf16.msra.mxu0 0
    %446 = vmatpush.bf16.msra.mxu0 0
    %447 = vmatpush.bf16.msra.mxu0 %v227
    %448 = vmatpush.bf16.msra.mxu0 %v225
    %449 = vmatpush.bf16.msra.mxu0 %v223
    %450 = vmatpush.bf16.msra.mxu0 %v221
    %451 = vmatmul.bf16.gmra.mxu0 %v441
    %v452 = vpop.f32.mrf.mxu0
    %v453 = vadd.f32 0.0, %v452
    %v454 = vpop.f32.mrf.mxu0
    %455 = vdwg.mxu0
    %456 = vmatpush.bf16.msra.mxu0 0
    %457 = vmatpush.bf16.msra.mxu0 0
    %458 = vmatpush.bf16.msra.mxu0 0
    %459 = vmatpush.bf16.msra.mxu0 0
    %460 = vmatpush.bf16.msra.mxu0 %v228
    %461 = vmatpush.bf16.msra.mxu0 %v226
    %462 = vmatpush.bf16.msra.mxu0 %v224
    %463 = vmatpush.bf16.msra.mxu0 %v222
    %464 = vmatmul.bf16.gmra.mxu0 %v441
    %v465 = vpop.f32.mrf.mxu0
    %v466 = vadd.f32 0.0, %v465
    %v467 = vpop.f32.mrf.mxu0
    %468 = vdwg.mxu0
    %v471 = vrot.slane %v453, 2
    %v472 = vrot.slane %v466, 2
    %v475 = vadd.f32 %v171, %v471
    %v476 = vadd.f32 %v185, %v472
    %v477 = vsub.f32 0.0, %v475
    %v478 = vsub.f32 0.0, %v476
    %v479 = vmul.f32 %v477, 1.442695
    %v480 = vpow.pop %v479
    %v481 = vmul.f32 %v478, 1.442695
    %v482 = vpow.pop %v481
    %v483 = vadd.f32 %v480, 1.0
    %v484 = vadd.f32 %v482, 1.0
    %v485 = vrcp.pop %v483
    %v486 = vrcp.pop %v484
    %v487 = vtanh.pop %v476
    %v489 = vrot.slane %v430, 6
    %v491 = vmul.f32 %v485, %v489
    %493 = vrot.lane.b32.xlu0 %v487, 64
    %v494 = vpop.permute.xlu0 %493
    %v496 = vmul.f32 %v485, %v494
    %498 = vrot.lane.b32.xlu0 %v496, 64
    %v499 = vpop.permute.xlu0 %498
    %v501 = vadd.f32 %v491, %v499
    %v502 = vtanh.pop %v501
    %504 = vrot.lane.b32.xlu0 %v502, 64
    %v505 = vpop.permute.xlu0 %504
    %v507 = vmul.f32 %v486, %v505
    %v508 = vpack.c.bf16 %v507, %v507
    %v510 = vrot.slane %v508, 3
    %v512 = vsel %vm237, %v510, 0
    %514 = vmatpush.bf16.msra.mxu0 0
    %515 = vmatpush.bf16.msra.mxu0 0
    %516 = vmatpush.bf16.msra.mxu0 0
    %517 = vmatpush.bf16.msra.mxu0 0
    %518 = vmatpush.bf16.msra.mxu0 %v227
    %519 = vmatpush.bf16.msra.mxu0 %v225
    %520 = vmatpush.bf16.msra.mxu0 %v223
    %521 = vmatpush.bf16.msra.mxu0 %v221
    %522 = vmatmul.bf16.gmra.mxu0 %v512
    %v523 = vpop.f32.mrf.mxu0
    %v524 = vadd.f32 0.0, %v523
    %v525 = vpop.f32.mrf.mxu0
    %526 = vdwg.mxu0
    %527 = vmatpush.bf16.msra.mxu0 0
    %528 = vmatpush.bf16.msra.mxu0 0
    %529 = vmatpush.bf16.msra.mxu0 0
    %530 = vmatpush.bf16.msra.mxu0 0
    %531 = vmatpush.bf16.msra.mxu0 %v228
    %532 = vmatpush.bf16.msra.mxu0 %v226
    %533 = vmatpush.bf16.msra.mxu0 %v224
    %534 = vmatpush.bf16.msra.mxu0 %v222
    %535 = vmatmul.bf16.gmra.mxu0 %v512
    %v536 = vpop.f32.mrf.mxu0
    %v537 = vadd.f32 0.0, %v536
    %v538 = vpop.f32.mrf.mxu0
    %539 = vdwg.mxu0
    %v540 = vadd.f32 %v173, %v524
    %v541 = vadd.f32 %v187, %v537
    %v542 = vsub.f32 0.0, %v540
    %v543 = vsub.f32 0.0, %v541
    %v544 = vmul.f32 %v542, 1.442695
    %v545 = vpow.pop %v544
    %v546 = vmul.f32 %v543, 1.442695
    %v547 = vpow.pop %v546
    %v548 = vadd.f32 %v545, 1.0
    %v549 = vadd.f32 %v547, 1.0
    %v550 = vrcp.pop %v548
    %v551 = vrcp.pop %v549
    %v552 = vtanh.pop %v541
    %v554 = vrot.slane %v501, 6
    %v556 = vmul.f32 %v550, %v554
    %558 = vrot.lane.b32.xlu0 %v552, 64
    %v559 = vpop.permute.xlu0 %558
    %v561 = vmul.f32 %v550, %v559
    %563 = vrot.lane.b32.xlu0 %v561, 64
    %v564 = vpop.permute.xlu0 %563
    %v566 = vadd.f32 %v556, %v564
    %v567 = vtanh.pop %v566
    %569 = vrot.lane.b32.xlu0 %v567, 64
    %v570 = vpop.permute.xlu0 %569
    %v572 = vmul.f32 %v551, %v570
    %v573 = vpack.c.bf16 %v572, %v572
    %v575 = vsel %vm237, %v573, 0
    %577 = vmatpush.bf16.msra.mxu0 0
    %578 = vmatpush.bf16.msra.mxu0 0
    %579 = vmatpush.bf16.msra.mxu0 0
    %580 = vmatpush.bf16.msra.mxu0 0
    %581 = vmatpush.bf16.msra.mxu0 %v227
    %582 = vmatpush.bf16.msra.mxu0 %v225
    %583 = vmatpush.bf16.msra.mxu0 %v223
    %584 = vmatpush.bf16.msra.mxu0 %v221
    %585 = vmatmul.bf16.gmra.mxu0 %v575
    %v586 = vpop.f32.mrf.mxu0
    %v587 = vadd.f32 0.0, %v586
    %v588 = vpop.f32.mrf.mxu0
    %589 = vdwg.mxu0
    %590 = vmatpush.bf16.msra.mxu0 0
    %591 = vmatpush.bf16.msra.mxu0 0
    %592 = vmatpush.bf16.msra.mxu0 0
    %593 = vmatpush.bf16.msra.mxu0 0
    %594 = vmatpush.bf16.msra.mxu0 %v228
    %595 = vmatpush.bf16.msra.mxu0 %v226
    %596 = vmatpush.bf16.msra.mxu0 %v224
    %597 = vmatpush.bf16.msra.mxu0 %v222
    %598 = vmatmul.bf16.gmra.mxu0 %v575
    %v599 = vpop.f32.mrf.mxu0
    %v600 = vadd.f32 0.0, %v599
    %v601 = vpop.f32.mrf.mxu0
    %602 = vdwg.mxu0
    %v605 = vrot.slane %v587, 6
    %v606 = vrot.slane %v600, 6
    %v609 = vadd.f32 %v173, %v605
    %v610 = vadd.f32 %v187, %v606
    %v611 = vsub.f32 0.0, %v609
    %v612 = vsub.f32 0.0, %v610
    %v613 = vmul.f32 %v611, 1.442695
    %v614 = vpow.pop %v613
    %v615 = vmul.f32 %v612, 1.442695
    %v616 = vpow.pop %v615
    %v617 = vadd.f32 %v614, 1.0
    %v618 = vadd.f32 %v616, 1.0
    %v619 = vrcp.pop %v617
    %v620 = vrcp.pop %v618
    %v621 = vtanh.pop %v610
    %v623 = vrot.slane %v566, 6
    %v625 = vmul.f32 %v619, %v623
    %627 = vrot.lane.b32.xlu0 %v621, 64
    %v628 = vpop.permute.xlu0 %627
    %v630 = vmul.f32 %v619, %v628
    %632 = vrot.lane.b32.xlu0 %v630, 64
    %v633 = vpop.permute.xlu0 %632
    %v635 = vadd.f32 %v625, %v633
    %v636 = vtanh.pop %v635
    %638 = vrot.lane.b32.xlu0 %v636, 64
    %v639 = vpop.permute.xlu0 %638
    %v641 = vmul.f32 %v620, %v639
    %v642 = vpack.c.bf16 %v641, %v641
    %v644 = vrot.slane %v642, 1
    %v646 = vsel %vm237, %v644, 0
    %648 = vmatpush.bf16.msra.mxu0 0
    %649 = vmatpush.bf16.msra.mxu0 0
    %650 = vmatpush.bf16.msra.mxu0 0
    %651 = vmatpush.bf16.msra.mxu0 0
    %652 = vmatpush.bf16.msra.mxu0 %v227
    %653 = vmatpush.bf16.msra.mxu0 %v225
    %654 = vmatpush.bf16.msra.mxu0 %v223
    %655 = vmatpush.bf16.msra.mxu0 %v221
    %656 = vmatmul.bf16.gmra.mxu0 %v646
    %v657 = vpop.f32.mrf.mxu0
    %v658 = vadd.f32 0.0, %v657
    %v659 = vpop.f32.mrf.mxu0
    %660 = vdwg.mxu0
    %661 = vmatpush.bf16.msra.mxu0 0
    %662 = vmatpush.bf16.msra.mxu0 0
    %663 = vmatpush.bf16.msra.mxu0 0
    %664 = vmatpush.bf16.msra.mxu0 0
    %665 = vmatpush.bf16.msra.mxu0 %v228
    %666 = vmatpush.bf16.msra.mxu0 %v226
    %667 = vmatpush.bf16.msra.mxu0 %v224
    %668 = vmatpush.bf16.msra.mxu0 %v222
    %669 = vmatmul.bf16.gmra.mxu0 %v646
    %v670 = vpop.f32.mrf.mxu0
    %v671 = vadd.f32 0.0, %v670
    %v672 = vpop.f32.mrf.mxu0
    %673 = vdwg.mxu0
    %v676 = vrot.slane %v658, 4
    %v677 = vrot.slane %v671, 4
    %v680 = vadd.f32 %v173, %v676
    %v681 = vadd.f32 %v187, %v677
    %v682 = vsub.f32 0.0, %v680
    %v683 = vsub.f32 0.0, %v681
    %v684 = vmul.f32 %v682, 1.442695
    %v685 = vpow.pop %v684
    %v686 = vmul.f32 %v683, 1.442695
    %v687 = vpow.pop %v686
    %v688 = vadd.f32 %v685, 1.0
    %v689 = vadd.f32 %v687, 1.0
    %v690 = vrcp.pop %v688
    %v691 = vrcp.pop %v689
    %v692 = vtanh.pop %v681
    %v694 = vrot.slane %v635, 6
    %v696 = vmul.f32 %v690, %v694
    %698 = vrot.lane.b32.xlu0 %v692, 64
    %v699 = vpop.permute.xlu0 %698
    %v701 = vmul.f32 %v690, %v699
    %703 = vrot.lane.b32.xlu0 %v701, 64
    %v704 = vpop.permute.xlu0 %703
    %v706 = vadd.f32 %v696, %v704
    %v707 = vtanh.pop %v706
    %709 = vrot.lane.b32.xlu0 %v707, 64
    %v710 = vpop.permute.xlu0 %709
    %v712 = vmul.f32 %v691, %v710
    %v713 = vpack.c.bf16 %v712, %v712
    %v715 = vrot.slane %v713, 2
    %v717 = vsel %vm237, %v715, 0
    %719 = vmatpush.bf16.msra.mxu0 0
    %720 = vmatpush.bf16.msra.mxu0 0
    %721 = vmatpush.bf16.msra.mxu0 0
    %722 = vmatpush.bf16.msra.mxu0 0
    %723 = vmatpush.bf16.msra.mxu0 %v227
    %724 = vmatpush.bf16.msra.mxu0 %v225
    %725 = vmatpush.bf16.msra.mxu0 %v223
    %726 = vmatpush.bf16.msra.mxu0 %v221
    %727 = vmatmul.bf16.gmra.mxu0 %v717
    %v728 = vpop.f32.mrf.mxu0
    %v729 = vadd.f32 0.0, %v728
    %v730 = vpop.f32.mrf.mxu0
    %731 = vdwg.mxu0
    %732 = vmatpush.bf16.msra.mxu0 0
    %733 = vmatpush.bf16.msra.mxu0 0
    %734 = vmatpush.bf16.msra.mxu0 0
    %735 = vmatpush.bf16.msra.mxu0 0
    %736 = vmatpush.bf16.msra.mxu0 %v228
    %737 = vmatpush.bf16.msra.mxu0 %v226
    %738 = vmatpush.bf16.msra.mxu0 %v224
    %739 = vmatpush.bf16.msra.mxu0 %v222
    %740 = vmatmul.bf16.gmra.mxu0 %v717
    %v741 = vpop.f32.mrf.mxu0
    %v742 = vadd.f32 0.0, %v741
    %v743 = vpop.f32.mrf.mxu0
    %744 = vdwg.mxu0
    %v747 = vrot.slane %v729, 2
    %v748 = vrot.slane %v742, 2
    %v751 = vadd.f32 %v173, %v747
    %v752 = vadd.f32 %v187, %v748
    %v753 = vsub.f32 0.0, %v751
    %v754 = vsub.f32 0.0, %v752
    %v755 = vmul.f32 %v753, 1.442695
    %v756 = vpow.pop %v755
    %v757 = vmul.f32 %v754, 1.442695
    %v758 = vpow.pop %v757
    %v759 = vadd.f32 %v756, 1.0
    %v760 = vadd.f32 %v758, 1.0
    %v761 = vrcp.pop %v759
    %v762 = vrcp.pop %v760
    %v763 = vtanh.pop %v752
    %v765 = vrot.slane %v706, 6
    %v767 = vmul.f32 %v761, %v765
    %769 = vrot.lane.b32.xlu0 %v763, 64
    %v770 = vpop.permute.xlu0 %769
    %v772 = vmul.f32 %v761, %v770
    %774 = vrot.lane.b32.xlu0 %v772, 64
    %v775 = vpop.permute.xlu0 %774
    %v777 = vadd.f32 %v767, %v775
    %v778 = vtanh.pop %v777
    %780 = vrot.lane.b32.xlu0 %v778, 64
    %v781 = vpop.permute.xlu0 %780
    %v783 = vmul.f32 %v762, %v781
    %v784 = vld [vmem:[%s6] sm:$0xff]
    %v785 = vld [vmem:[%s6 + $0x8] sm:$0xff]
    %v786 = vld [vmem:[%s6 + $0x10] sm:$0xff]
    %v787 = vld [vmem:[%s6 + $0x18] sm:$0xff]
    %v788 = vld [vmem:[%s6 + $0x20] sm:$0xff]
    %v789 = vld [vmem:[%s6 + $0x28] sm:$0xff]
    %v790 = vld [vmem:[%s6 + $0x30] sm:$0xff]
    %v791 = vld [vmem:[%s6 + $0x38] sm:$0xff]
    %v792 = vld [vmem:[#allocation2] sm:$0x1]
    %v794 = vperm.slane %v792, 0
    %v797 = vrot.slane %v783, 6
    %v798 = vsel %vm237, %v797, 0
    %800 = vmatpush.msra.mxu0 0.0
    %801 = vmatpush.msra.mxu0 0.0
    %802 = vmatpush.msra.mxu0 0.0
    %803 = vmatpush.msra.mxu0 0.0
    %804 = vmatpush.msra.mxu0 0.0
    %805 = vmatpush.msra.mxu0 0.0
    %806 = vmatpush.msra.mxu0 0.0
    %807 = vmatpush.msra.mxu0 0.0
    %808 = vmatpush.msra.mxu0 %v791
    %809 = vmatpush.msra.mxu0 %v790
    %810 = vmatpush.msra.mxu0 %v789
    %811 = vmatpush.msra.mxu0 %v788
    %812 = vmatpush.msra.mxu0 %v787
    %813 = vmatpush.msra.mxu0 %v786
    %814 = vmatpush.msra.mxu0 %v785
    %815 = vmatpush.msra.mxu0 %v784
    %816 = vmatmul.f32.gmra.mxu0 %v798
    %v817 = vpop.f32.mrf.mxu0
    %v818 = vadd.f32 %v794, %v817
    %819 = vdwg.mxu0
    %vm820 = vcmask 1024
    %821 = vst.msk [vmem:[%s8] sm:$0x3] %vm820, %v818
    // Predicated region
    $region46: #{tpu_custom_call.1} parent=1 // pred_check
      _
    $region47: #{tpu_custom_call.1} parent=1 // pred_check_branch
      %823 = sbr.rel (0) target = $region49
    $region48: #{tpu_custom_call.1} parent=1 // pred_region
      _
    $region49: #{tpu_custom_call.1} parent=1 // pred_fallthru
      _
    // Predicated region
    $region50: #{tpu_custom_call.1} parent=1 // pred_check
      _
    $region51: #{tpu_custom_call.1} parent=1 // pred_check_branch
      %825 = sbr.rel (0) target = $region53
    $region52: #{tpu_custom_call.1} parent=1 // pred_region
      _
    $region53: #{tpu_custom_call.1} parent=1 // pred_fallthru
      _
    %826 = vsyncpa [#allocation4], 1
    %827 = vsyncpa [#allocation6], 1

</llo_original>
